<compile_context>
chip_gen: v6e
topology: v6e:2x2x1
jax: 0.10.0
libtpu: 0.0.40
codegen_flags: <defaults>
</compile_context>

<pallas_src>
import functools

import jax
import jax.numpy as jnp
from jax import lax
from jax.experimental import pallas as pl
from jax.experimental.pallas import tpu as pltpu


def _round_up(x, m):
    return (x + m - 1) // m * m


def _lstm_chunk_kernel(T_total, t_chunk, xp_ref, whh_ref, out_ref, h_ref, c_ref):
    """One (batch tile, time chunk) grid cell.

    xp_ref : (t_chunk, block_b, 4*Hp) pre-projected gates (x@W_ih^T + b), time-major
    whh_ref: (Hp, 4*Hp)               W_hh^T (matmul dtype, e.g. bf16)
    out_ref: (block_b, Hp)            final hidden state (written at the last chunk)
    h_ref, c_ref: (block_b, Hp) f32   VMEM scratch carrying state across time chunks
    """
    t_idx = pl.program_id(1)
    Hp = whh_ref.shape[0]
    mm_dtype = whh_ref.dtype

    @pl.when(t_idx == 0)
    def _():
        h_ref[...] = jnp.zeros_like(h_ref)
        c_ref[...] = jnp.zeros_like(c_ref)

    # Number of valid timesteps in this chunk (the last chunk may be partial).
    steps = jnp.minimum(t_chunk, T_total - t_idx * t_chunk)

    def step(t, carry):
        h, c = carry
        # Recurrent matmul: bf16 operands / f32 accumulation; W_hh^T is streamed
        # from VMEM each step to keep vreg pressure low.
        gates = xp_ref[t].astype(jnp.float32) + jnp.dot(
            h.astype(mm_dtype), whh_ref[...], preferred_element_type=jnp.float32)
        i_g = jax.nn.sigmoid(gates[:, 0 * Hp:1 * Hp])
        f_g = jax.nn.sigmoid(gates[:, 1 * Hp:2 * Hp])
        g_g = jnp.tanh(gates[:, 2 * Hp:3 * Hp])
        o_g = jax.nn.sigmoid(gates[:, 3 * Hp:4 * Hp])
        c_new = f_g * c + i_g * g_g
        h_new = o_g * jnp.tanh(c_new)
        return h_new, c_new

    # No unrolling: iterations are serially dependent, unrolling only doubles the
    # live vreg set (per the perf review).
    h_fin, c_fin = lax.fori_loop(0, steps, step, (h_ref[...], c_ref[...]))
    h_ref[...] = h_fin
    c_ref[...] = c_fin

    @pl.when(t_idx == pl.num_programs(1) - 1)
    def _():
        out_ref[...] = h_fin.astype(out_ref.dtype)


def lstm_encoder_pallas(x, w_ih, w_hh, b_ih, b_hh, *, block_b=None, t_chunk=None,
                        gate_dtype=jnp.bfloat16, matmul_dtype=jnp.bfloat16):
    """x: (B, T, D) float32. Returns h_n: (B, H) float32."""
    f32 = jnp.float32
    B, T, D = x.shape
    H = w_ih.shape[0] // 4

    # --- hidden padding: 4*Hp must be a multiple of 128 lanes.  For small H keep the
    # gates packed (Hp = round_up(H, 32)); for larger H keep gate slices vreg-aligned.
    Hp = _round_up(H, 32) if H <= 64 else _round_up(H, 128)
    G = 4 * Hp

    # --- batch padding / tiling: ensure >=2 batch tiles when possible so the
    # "parallel" axis can spread across v7x's two TensorCores.
    Bp = _round_up(max(B, 1), 8)
    if block_b is None:
        block_b = min(128, _round_up(pl.cdiv(Bp, 2), 8)) if Bp >= 16 else Bp
    block_b = _round_up(min(block_b, 128), 8)
    Bp = _round_up(Bp, block_b)

    # --- time chunking: keep the double-buffered gate-stream chunk modest so it fits
    # every generation's scoped VMEM (v5e 16 MiB default, v7x 64 MiB physical).
    gate_bytes_per_step = block_b * G * jnp.dtype(gate_dtype).itemsize
    if t_chunk is None:
        budget = 4 * 1024 * 1024  # per-buffer gate-stream budget
        t_chunk = max(1, min(T, budget // max(1, gate_bytes_per_step)))
    t_chunk = max(1, min(t_chunk, T))
    n_chunks = pl.cdiv(T, t_chunk)
    Tp = n_chunks * t_chunk

    # --- parameter padding (zero-padded gate lanes stay inert: pre-activation 0 =>
    # padded c stays 0, padded h stays 0).
    def pad_gate_rows(w):
        X = w.shape[-1]
        w4 = w.reshape(4, H, X)
        return jnp.zeros((4, Hp, X), w.dtype).at[:, :H, :].set(w4).reshape(G, X)

    w_ih_p = pad_gate_rows(w_ih.astype(f32))                            # (G, D)
    w_hh_p = pad_gate_rows(w_hh.astype(f32))                            # (G, H)
    w_hh_p = jnp.zeros((G, Hp), f32).at[:, :H].set(w_hh_p)              # (G, Hp)
    b_p = pad_gate_rows((b_ih + b_hh).astype(f32)[:, None])[:, 0]       # (G,)

    # --- hoisted input projection, emitted time-major directly: (Tp, Bp, G) bf16.
    x_p = jnp.zeros((Bp, T, D), f32).at[:B].set(x.astype(f32))
    x_proj = jnp.einsum('btd,gd->tbg',
                        x_p.astype(matmul_dtype), w_ih_p.astype(matmul_dtype),
                        preferred_element_type=f32) + b_p
    x_proj = x_proj.astype(gate_dtype)
    if Tp > T:
        x_proj = jnp.concatenate(
            [x_proj, jnp.zeros((Tp - T, Bp, G), gate_dtype)], axis=0)

    whh_t = w_hh_p.T.astype(matmul_dtype)                               # (Hp, G)

    grid = (Bp // block_b, n_chunks)
    kernel = functools.partial(_lstm_chunk_kernel, T, t_chunk)

    # VMEM estimate: double-buffered gate chunk dominates; cap at 48 MiB (safe on all
    # generations, including v7x's 64 MiB physical per TensorCore).
    vmem_needed = (2 * t_chunk * gate_bytes_per_step
                   + 2 * Hp * G * jnp.dtype(matmul_dtype).itemsize
                   + 4 * block_b * Hp * 4
                   + (1 << 20))
    vmem_limit = int(min(48 * 1024 * 1024, max(vmem_needed, 16 * 1024 * 1024)))

    out = pl.pallas_call(
        kernel,
        out_shape=jax.ShapeDtypeStruct((Bp, Hp), f32),
        grid_spec=pltpu.PrefetchScalarGridSpec(
            num_scalar_prefetch=0,
            grid=grid,
            in_specs=[
                pl.BlockSpec((t_chunk, block_b, G), lambda b, t: (t, b, 0)),
                pl.BlockSpec((Hp, G), lambda b, t: (0, 0)),
            ],
            out_specs=pl.BlockSpec((block_b, Hp), lambda b, t: (b, 0)),
            scratch_shapes=[
                pltpu.VMEM((block_b, Hp), f32),   # h carry across time chunks
                pltpu.VMEM((block_b, Hp), f32),   # c carry across time chunks
            ],
        ),
        compiler_params=pltpu.CompilerParams(
            dimension_semantics=("parallel", "arbitrary"),
            vmem_limit_bytes=vmem_limit,
        ),
    )(x_proj, whh_t)

    return out[:B, :H]


def lstm_encoder_ref(x, w_ih, w_hh, b_ih, b_hh):
    """Pure-JAX reference of PyTorch nn.LSTM final hidden state."""
    B, T, D = x.shape
    H = w_hh.shape[1]

    def step(carry, x_t):
        h, c = carry
        gates = x_t @ w_ih.T + b_ih + h @ w_hh.T + b_hh
        i = jax.nn.sigmoid(gates[:, 0 * H:1 * H])
        f = jax.nn.sigmoid(gates[:, 1 * H:2 * H])
        g = jnp.tanh(gates[:, 2 * H:3 * H])
        o = jax.nn.sigmoid(gates[:, 3 * H:4 * H])
        c = f * c + i * g
        h = o * jnp.tanh(c)
        return (h, c), None

    h0 = jnp.zeros((B, H), jnp.float32)
    c0 = jnp.zeros((B, H), jnp.float32)
    (h_n, _), _ = lax.scan(step, (h0, c0), jnp.transpose(x, (1, 0, 2)))
    return h_n


if __name__ == "__main__":
    B, T, D, H = 2, 8, 4, 32  # batch, seq_len, input_dim, hidden_dim

    key = jax.random.PRNGKey(0)
    kx, kwi, kwh, kbi, kbh = jax.random.split(key, 5)

    # PyTorch-style uniform(-1/sqrt(H), 1/sqrt(H)) init for the LSTM parameters.
    bound = 1.0 / jnp.sqrt(jnp.float32(H))
    x = jax.random.normal(kx, (B, T, D), dtype=jnp.float32)
    w_ih = jax.random.uniform(kwi, (4 * H, D), jnp.float32, -bound, bound)
    w_hh = jax.random.uniform(kwh, (4 * H, H), jnp.float32, -bound, bound)
    b_ih = jax.random.uniform(kbi, (4 * H,), jnp.float32, -bound, bound)
    b_hh = jax.random.uniform(kbh, (4 * H,), jnp.float32, -bound, bound)

    h_n = lstm_encoder_pallas(x, w_ih, w_hh, b_ih, b_hh)
    jax.block_until_ready(h_n)

    h_ref = lstm_encoder_ref(x, w_ih, w_hh, b_ih, b_hh)
    assert h_n.shape == (B, H)
    # bf16 gate stream + bf16 matmul operands (f32 accumulation / f32 gate math):
    # compare against the f32 reference with a bf16-appropriate tolerance.
    assert jnp.allclose(h_n, h_ref, atol=3e-2, rtol=3e-2), "mismatch vs reference"

    # Also exercise the multi-chunk path (partial last chunk, h/c scratch carry).
    h_n_chunked = lstm_encoder_pallas(x, w_ih, w_hh, b_ih, b_hh, t_chunk=3)
    jax.block_until_ready(h_n_chunked)
    assert jnp.allclose(h_n_chunked, h_n, atol=1e-4, rtol=1e-4), "chunked-path mismatch"

    print("KERNEL_OK")
</pallas_src>

<mosaic_0001>
module attributes {stable_mosaic.version = 11 : i64} {
  func.func @_lstm_chunk_kernel(%arg0: i32, %arg1: i32, %arg2: memref<8x8x128xbf16, #tpu.memory_space<vmem>>, %arg3: memref<32x128xbf16, #tpu.memory_space<vmem>>, %arg4: memref<8x32xf32, #tpu.memory_space<vmem>>, %arg5: memref<8x32xf32, #tpu.memory_space<vmem>>, %arg6: memref<8x32xf32, #tpu.memory_space<vmem>>) attributes {dimension_semantics = [#tpu.dimension_semantics<parallel>, #tpu.dimension_semantics<arbitrary>], iteration_bounds = array<i64: 1, 1>, scalar_prefetch = 0 : i64, scratch_operands = 2 : i64, tpu.core_type = #tpu.core_type<tc>, window_params = [{transform_indices = @transform_0, window_bounds = array<i64: 8, 8, 128>}, {pipeline_mode = #tpu.pipeline_mode<synchronous>, transform_indices = @transform_1, window_bounds = array<i64: 32, 128>}, {transform_indices = @transform_2, window_bounds = array<i64: 8, 32>}]} {
    %c0_i32 = arith.constant 0 : i32
    %0 = arith.cmpi eq, %arg1, %c0_i32 : i32
    %1 = arith.extui %0 : i1 to i32
    %c0_i32_0 = arith.constant 0 : i32
    %2 = arith.cmpi ne, %1, %c0_i32_0 : i32
    scf.if %2 {
      %cst = arith.constant 0.000000e+00 : f32
      %16 = vector.broadcast %cst : f32 to vector<8x32xf32>
      %c0_13 = arith.constant 0 : index
      %c0_14 = arith.constant 0 : index
      %17 = vector.load %arg5[%c0_13, %c0_14] : memref<8x32xf32, #tpu.memory_space<vmem>>, vector<8x32xf32>
      tpu.vector_store %arg5[%c0_13, %c0_14], %16 {strides = array<i32>} : memref<8x32xf32, #tpu.memory_space<vmem>>, vector<8x32xf32>,
      %cst_15 = arith.constant 0.000000e+00 : f32
      %18 = vector.broadcast %cst_15 : f32 to vector<8x32xf32>
      %c0_16 = arith.constant 0 : index
      %c0_17 = arith.constant 0 : index
      %19 = vector.load %arg6[%c0_16, %c0_17] : memref<8x32xf32, #tpu.memory_space<vmem>>, vector<8x32xf32>
      tpu.vector_store %arg6[%c0_16, %c0_17], %18 {strides = array<i32>} : memref<8x32xf32, #tpu.memory_space<vmem>>, vector<8x32xf32>,
    } else {
    }
    %c8_i32 = arith.constant 8 : i32
    %3 = arith.muli %arg1, %c8_i32 : i32
    %c8_i32_1 = arith.constant 8 : i32
    %4 = arith.subi %c8_i32_1, %3 : i32
    %c8_i32_2 = arith.constant 8 : i32
    %5 = arith.minsi %c8_i32_2, %4 : i32
    %c0 = arith.constant 0 : index
    %c0_3 = arith.constant 0 : index
    %6 = vector.load %arg5[%c0, %c0_3] : memref<8x32xf32, #tpu.memory_space<vmem>>, vector<8x32xf32>
    %c0_4 = arith.constant 0 : index
    %c0_5 = arith.constant 0 : index
    %7 = vector.load %arg6[%c0_4, %c0_5] : memref<8x32xf32, #tpu.memory_space<vmem>>, vector<8x32xf32>
    %c0_i32_6 = arith.constant 0 : i32
    %8 = arith.subi %5, %c0_i32_6 : i32
    %9 = arith.addi %c0_i32_6, %8 : i32
    %c1_i32 = arith.constant 1 : i32
    %10:2 = scf.for %arg7 = %c0_i32_6 to %9 step %c1_i32 iter_args(%arg8 = %6, %arg9 = %7) -> (vector<8x32xf32>, vector<8x32xf32>)  : i32 {
      %16 = arith.index_cast %arg7 : i32 to index
      %c0_13 = arith.constant 0 : index
      %c0_14 = arith.constant 0 : index
      %17 = vector.load %arg2[%16, %c0_13, %c0_14] : memref<8x8x128xbf16, #tpu.memory_space<vmem>>, vector<1x8x128xbf16>
      %18 = vector.shape_cast %17 : vector<1x8x128xbf16> to vector<8x128xbf16>
      %19 = arith.extf %18 : vector<8x128xbf16> to vector<8x128xf32>
      %20 = arith.truncf %arg8 : vector<8x32xf32> to vector<8x32xbf16>
      %c0_15 = arith.constant 0 : index
      %c0_16 = arith.constant 0 : index
      %21 = vector.load %arg3[%c0_15, %c0_16] : memref<32x128xbf16, #tpu.memory_space<vmem>>, vector<32x128xbf16>
      %cst = arith.constant dense<0.000000e+00> : vector<8x128xf32>
      %22 = tpu.matmul %20, %21, %cst {dimension_numbers = #tpu.dot_dimension_numbers<[1], [0], [0], [1], [0, 0, 1, 1], [], []>} : vector<8x32xbf16>, vector<32x128xbf16>, vector<8x128xf32> -> vector<8x128xf32>
      %23 = arith.addf %19, %22 : vector<8x128xf32>
      %24 = vector.extract_strided_slice %23 {offsets = [0, 0], sizes = [8, 32], strides = [1, 1]} : vector<8x128xf32> to vector<8x32xf32>
      %25 = arith.negf %24 : vector<8x32xf32>
      %26 = math.exp %25 : vector<8x32xf32>
      %cst_17 = arith.constant 1.000000e+00 : f32
      %27 = vector.broadcast %cst_17 : f32 to vector<8x32xf32>
      %28 = arith.addf %27, %26 : vector<8x32xf32>
      %29 = arith.divf %27, %28 : vector<8x32xf32>
      %30 = vector.extract_strided_slice %23 {offsets = [0, 32], sizes = [8, 32], strides = [1, 1]} : vector<8x128xf32> to vector<8x32xf32>
      %31 = arith.negf %30 : vector<8x32xf32>
      %32 = math.exp %31 : vector<8x32xf32>
      %cst_18 = arith.constant 1.000000e+00 : f32
      %33 = vector.broadcast %cst_18 : f32 to vector<8x32xf32>
      %34 = arith.addf %33, %32 : vector<8x32xf32>
      %35 = arith.divf %33, %34 : vector<8x32xf32>
      %36 = vector.extract_strided_slice %23 {offsets = [0, 64], sizes = [8, 32], strides = [1, 1]} : vector<8x128xf32> to vector<8x32xf32>
      %37 = math.tanh %36 : vector<8x32xf32>
      %38 = vector.extract_strided_slice %23 {offsets = [0, 96], sizes = [8, 32], strides = [1, 1]} : vector<8x128xf32> to vector<8x32xf32>
      %39 = arith.negf %38 : vector<8x32xf32>
      %40 = math.exp %39 : vector<8x32xf32>
      %cst_19 = arith.constant 1.000000e+00 : f32
      %41 = vector.broadcast %cst_19 : f32 to vector<8x32xf32>
      %42 = arith.addf %41, %40 : vector<8x32xf32>
      %43 = arith.divf %41, %42 : vector<8x32xf32>
      %44 = arith.mulf %35, %arg9 : vector<8x32xf32>
      %45 = arith.mulf %29, %37 : vector<8x32xf32>
      %46 = arith.addf %44, %45 : vector<8x32xf32>
      %47 = math.tanh %46 : vector<8x32xf32>
      %48 = arith.mulf %43, %47 : vector<8x32xf32>
      scf.yield %48, %46 : vector<8x32xf32>, vector<8x32xf32>
    }
    %c0_7 = arith.constant 0 : index
    %c0_8 = arith.constant 0 : index
    %11 = vector.load %arg5[%c0_7, %c0_8] : memref<8x32xf32, #tpu.memory_space<vmem>>, vector<8x32xf32>
    tpu.vector_store %arg5[%c0_7, %c0_8], %10#0 {strides = array<i32>} : memref<8x32xf32, #tpu.memory_space<vmem>>, vector<8x32xf32>,
    %c0_9 = arith.constant 0 : index
    %c0_10 = arith.constant 0 : index
    %12 = vector.load %arg6[%c0_9, %c0_10] : memref<8x32xf32, #tpu.memory_space<vmem>>, vector<8x32xf32>
    tpu.vector_store %arg6[%c0_9, %c0_10], %10#1 {strides = array<i32>} : memref<8x32xf32, #tpu.memory_space<vmem>>, vector<8x32xf32>,
    %c0_i32_11 = arith.constant 0 : i32
    %13 = arith.cmpi eq, %arg1, %c0_i32_11 : i32
    %14 = arith.extui %13 : i1 to i32
    %c0_i32_12 = arith.constant 0 : i32
    %15 = arith.cmpi ne, %14, %c0_i32_12 : i32
    scf.if %15 {
      %c0_13 = arith.constant 0 : index
      %c0_14 = arith.constant 0 : index
      %16 = vector.load %arg4[%c0_13, %c0_14] : memref<8x32xf32, #tpu.memory_space<vmem>>, vector<8x32xf32>
      tpu.vector_store %arg4[%c0_13, %c0_14], %10#0 {strides = array<i32>} : memref<8x32xf32, #tpu.memory_space<vmem>>, vector<8x32xf32>,
    } else {
    }
    return
  }
  func.func @transform_0(%arg0: i32, %arg1: i32) -> (i32, i32, i32) {
    %c0_i32 = arith.constant 0 : i32
    %c0_i32_0 = arith.constant 0 : i32
    return %arg1, %arg0, %c0_i32 : i32, i32, i32
  }
  func.func @transform_1(%arg0: i32, %arg1: i32) -> (i32, i32) {
    %c0_i32 = arith.constant 0 : i32
    %c0_i32_0 = arith.constant 0 : i32
    %c0_i32_1 = arith.constant 0 : i32
    return %c0_i32, %c0_i32_0 : i32, i32
  }
  func.func @transform_2(%arg0: i32, %arg1: i32) -> (i32, i32) {
    %c0_i32 = arith.constant 0 : i32
    %c0_i32_0 = arith.constant 0 : i32
    return %arg0, %c0_i32 : i32, i32
  }
}

</mosaic_0001>

<llo_original>
// kernel: tpu_custom_call.1
$region0: #{tpu_custom_call.1}
  #allocation0 [shape = 'u32[]', space=smem, size = 0x4, offset = 0x4, fixed_abs, tag = 'smem constant byte address 0x4 - core index']
  #allocation1 [shape = 'u32[144,128]{1,0:T(1,128)}', space=vmem, size = 0x12000, scoped, tag = 'internal scratch']
  #allocation2 [shape = 'f32[8,32]{1,0:T(8,128)}', space=vmem, size = 0x1000, scoped, tag = 'scratch operand']
  #allocation3 [shape = 'f32[8,32]{1,0:T(8,128)}', space=vmem, size = 0x1000, scoped, tag = 'scratch operand']
  %s0 = inlined_call_operand.hbm [shape: bf16[8,8,128], index: 0, kind: input, shape index: {}]
  %s1 = inlined_call_operand.hbm [shape: bf16[32,128], index: 1, kind: input, shape index: {}]
  %s2 = inlined_call_operand.hbm [shape: f32[8,32], index: 2, kind: output, shape index: {}]
  %s3 = sld [smem:[#allocation0]]
  $region41: #{tpu_custom_call.1} parent=0
    _
  %s5 = ssub.s32 1, %s3
  %s6 = scalar_select 0, %s5, %s3
  $region1: #{tpu_custom_call.1} parent=0
    #allocation4 [shape = 'u8[16384]{0}', space=vmem, size = 0x4000, scoped, tag = 'input window, operand 0, single buffered']
    #allocation5 [shape = 's32[1]{0}', space=sflag, size = 0x4, scoped, tag = 'scoped memory for tpu_custom_call.1']
    #allocation6 [shape = 's32[1]{0}', space=sflag, size = 0x4, scoped, tag = 'scoped memory for tpu_custom_call.1']
    #allocation7 [shape = 'u8[8192]{0}', space=vmem, size = 0x2000, scoped, tag = 'input window, operand 1, single buffered']
    #allocation8 [shape = 's32[1]{0}', space=sflag, size = 0x4, scoped, tag = 'scoped memory for tpu_custom_call.1']
    #allocation9 [shape = 'u8[4096]{0}', space=vmem, size = 0x1000, scoped, tag = 'output window, operand 0, single buffered']
    %7 = vsyncpa [#allocation5], 0
    %8 = vsyncpa [#allocation8], 0
    %9 = vsyncpa [#allocation6], 0
    // Predicated region
    $region2: #{tpu_custom_call.1} parent=1 // pred_check
      _
    $region3: #{tpu_custom_call.1} parent=1 // pred_check_branch
      %11 = sbr.rel (0) target = $region5
    $region4: #{tpu_custom_call.1} parent=1 // pred_region
      %s13 = ssub.s32 512, 512
      %14 = vsyncadd [#allocation5], %s13
      %s15 = sshll.u32 [#allocation4], 4
      %s16 = int_to_ptr.vmem [resolvable:$true] %s15
      %21 = dma.hbm_to_vmem [thread:$0]  %s0, 512, %s16, [#allocation5], 64, 64, 4
    $region5: #{tpu_custom_call.1} parent=1 // pred_fallthru
      _
    // Predicated region
    $region6: #{tpu_custom_call.1} parent=1 // pred_check
      _
    $region7: #{tpu_custom_call.1} parent=1 // pred_check_branch
      %23 = sbr.rel (0) target = $region9
    $region8: #{tpu_custom_call.1} parent=1 // pred_region
      %s25 = ssub.s32 256, 256
      %26 = vsyncadd [#allocation8], %s25
      %s27 = sshll.u32 [#allocation7], 4
      %s28 = int_to_ptr.vmem [resolvable:$true] %s27
      %33 = dma.hbm_to_vmem [thread:$0]  %s1, 256, %s28, [#allocation8], 64, 64, 4
    $region9: #{tpu_custom_call.1} parent=1 // pred_fallthru
      _
    // Predicated region
    $region10: #{tpu_custom_call.1} parent=1 // pred_check
      _
    $region11: #{tpu_custom_call.1} parent=1 // pred_check_branch
      %35 = sbr.rel (0) target = $region13
    $region12: #{tpu_custom_call.1} parent=1 // pred_region
      %36 = dma.done [#allocation5], 512
    $region13: #{tpu_custom_call.1} parent=1 // pred_fallthru
      _
    // Predicated region
    $region14: #{tpu_custom_call.1} parent=1 // pred_check
      _
    $region15: #{tpu_custom_call.1} parent=1 // pred_check_branch
      %38 = sbr.rel (0) target = $region17
    $region16: #{tpu_custom_call.1} parent=1 // pred_region
      %39 = dma.done [#allocation8], 256
    $region17: #{tpu_custom_call.1} parent=1 // pred_fallthru
      _
    %p41 = scmp.eq.s32.totalorder 0, 0
    // Predicated region
    $region18: #{tpu_custom_call.1} parent=1 // pred_check
      %p42 = pneg %p41
    $region19: #{tpu_custom_call.1} parent=1 // pred_check_branch
      %44 = sbr.rel (%p42) target = $region21
    $region20: #{tpu_custom_call.1} parent=1 // pred_region
      %vm45 = vcmask 261120
      %46 = vst.msk [vmem:[#allocation2] sm:$0xff] %vm45, 0.0
      %47 = vst.msk [vmem:[#allocation3] sm:$0xff] %vm45, 0.0
    $region21: #{tpu_custom_call.1} parent=1 // pred_fallthru
      _
    %s48 = smul.u32 0, 8
    %s49 = ssub.s32 8, %s48
    %p50 = scmp.lt.s32.totalorder %s49, 8
    %s51 = scalar_select %p50, %s49, 8
    %v52 = vld [vmem:[#allocation2] sm:$0xff]
    %v53 = vld [vmem:[#allocation3] sm:$0xff]
    // While loop
    $region22: #{tpu_custom_call.1} parent=1 // loop_pre_header
      _
    $region23: #{tpu_custom_call.1} parent=1 // loop_header
      %s55 = sphi 0, %s57
      %p56 = scmp.ge.s32.totalorder %s55, %s51
      %v60 = vphi %v52, %v158
      %v61 = vphi %v53, %v162
    $region24: #{tpu_custom_call.1} parent=1 // loop_header_branch
      %59 = sbr.rel (%p56) target = $region28
    $region25: #{tpu_custom_call.1} parent=1 // loop_body
      %s62 = smul.addr %s55, 4
      %s63 = scalar_lea.vmem [#allocation4], %s62
      %v64 = vld [vmem:[%s63] sm:$0xf]
      %v65 = vunpack.c.l.bf16 %v64
      %v66 = vpack.c.bf16 %v60, %v60
      %v67 = vld [vmem:[#allocation7] sm:$0xf]
      %v68 = vld [vmem:[#allocation7 + $0x4] sm:$0xf]
      %v69 = vld [vmem:[#allocation7 + $0x8] sm:$0xf]
      %v70 = vld [vmem:[#allocation7 + $0xc] sm:$0xf]
      %v75 = vunpack.c.l.b16 %v67
      %v76 = vunpack.c.l.b16 %v68
      %v77 = vunpack.c.l.b16 %v69
      %v78 = vunpack.c.l.b16 %v70
      %v79 = vpack.c.b16 %v76, %v75
      %v80 = vpack.c.b16 %v78, %v77
      %vm83 = vcmask 261120
      %v85 = vsel %vm83, %v66, 0
      %87 = vmatprep.subr.bf16.mxu0 0
      %88 = vmatpush1.bf16.msra.mxu0 0
      %89 = vmatprep.subr.bf16.mxu0 0
      %90 = vmatpush1.bf16.msra.mxu0 0
      %91 = vmatprep.subr.bf16.mxu0 0
      %92 = vmatpush1.bf16.msra.mxu0 0
      %93 = vmatprep.subr.bf16.mxu0 0
      %94 = vmatpush1.bf16.msra.mxu0 0
      %95 = vmatprep.subr.bf16.mxu0 0
      %96 = vmatpush1.bf16.msra.mxu0 0
      %97 = vmatprep.subr.bf16.mxu0 0
      %98 = vmatpush1.bf16.msra.mxu0 0
      %99 = vmatprep.subr.bf16.mxu0 0
      %100 = vmatpush1.bf16.msra.mxu0 %v80
      %101 = vmatprep.subr.bf16.mxu0 0
      %102 = vmatpush1.bf16.msra.mxu0 %v79
      %103 = vmatprep.subr.bf16.mxu0 0
      %104 = vmatpush2.bf16.msra.mxu0 0
      %105 = vmatprep.subr.bf16.mxu0 0
      %106 = vmatpush2.bf16.msra.mxu0 0
      %107 = vmatprep.subr.bf16.mxu0 0
      %108 = vmatpush2.bf16.msra.mxu0 0
      %109 = vmatprep.subr.bf16.mxu0 0
      %110 = vmatpush2.bf16.msra.mxu0 0
      %111 = vmatprep.subr.bf16.mxu0 0
      %112 = vmatpush2.bf16.msra.mxu0 0
      %113 = vmatprep.subr.bf16.mxu0 0
      %114 = vmatpush2.bf16.msra.mxu0 0
      %115 = vmatprep.subr.bf16.mxu0 0
      %116 = vmatpush2.bf16.msra.mxu0 0
      %117 = vmatprep.subr.bf16.mxu0 0
      %118 = vmatpush2.bf16.msra.mxu0 0
      %119 = vmatprep.mubr.bf16.mxu0 0
      %120 = vmatmul.mubr.bf16.gmra.mxu0 %v85
      %v121 = vpop.f32.mrf.mxu0
      %v122 = vadd.f32 0.0, %v121
      %v123 = vpop.f32.mrf.mxu0
      %v124 = vpop.f32.mrf.mxu0
      %v125 = vpop.f32.mrf.mxu0
      %126 = vdwg.mxu0
      %v127 = vadd.f32 %v65, %v122
      %v128 = vxor.u32 %v127, 2147483648
      %v129 = vmul.f32 %v128, 1.442695
      %v130 = vpow.pop %v129
      %v131 = vadd.f32 %v130, 1.0
      %v132 = vrcp.pop %v131
      %v133 = vmul.f32 1.0, %v132
      %v134 = vtanh.pop %v127
      %136 = vrot.lane.b32.xlu0 %v61, 32
      %v137 = vpop.permute.xlu0 %136
      %v139 = vmul.f32 %v133, %v137
      %141 = vrot.lane.b32.xlu0 %v134, 64
      %v142 = vpop.permute.xlu0 %141
      %v144 = vmul.f32 %v133, %v142
      %146 = vrot.lane.b32.xlu0 %v144, 32
      %v147 = vpop.permute.xlu0 %146
      %v149 = vadd.f32 %v139, %v147
      %v150 = vtanh.pop %v149
      %152 = vrot.lane.b32.xlu0 %v150, 64
      %v153 = vpop.permute.xlu0 %152
      %v155 = vmul.f32 %v133, %v153
      %157 = vrot.lane.b32.xlu0 %v155, 32
      %v158 = vpop.permute.xlu0 %157
      %161 = vrot.lane.b32.xlu0 %v149, 96
      %v162 = vpop.permute.xlu0 %161
    $region26: #{tpu_custom_call.1} parent=1 // loop_footer
      %s57 = sadd.s32 %s55, 1
    $region27: #{tpu_custom_call.1} parent=1 // loop_footer_branch
      %54 = sbr.rel target = $region23
    $region28: #{tpu_custom_call.1} parent=1 // loop_exit
      _
    %vm164 = vcmask 261120
    %165 = vst.msk [vmem:[#allocation2] sm:$0xff] %vm164, %v60
    %166 = vst.msk [vmem:[#allocation3] sm:$0xff] %vm164, %v61
    // Predicated region
    $region29: #{tpu_custom_call.1} parent=1 // pred_check
      %p167 = pneg %p41
    $region30: #{tpu_custom_call.1} parent=1 // pred_check_branch
      %169 = sbr.rel (%p167) target = $region32
    $region31: #{tpu_custom_call.1} parent=1 // pred_region
      %170 = vst.msk [vmem:[#allocation9] sm:$0xff] %vm164, %v60
    $region32: #{tpu_custom_call.1} parent=1 // pred_fallthru
      _
    // Predicated region
    $region33: #{tpu_custom_call.1} parent=1 // pred_check
      _
    $region34: #{tpu_custom_call.1} parent=1 // pred_check_branch
      %172 = sbr.rel (0) target = $region36
    $region35: #{tpu_custom_call.1} parent=1 // pred_region
      %s174 = ssub.s32 128, 128
      %175 = vsyncadd [#allocation6], %s174
      %s177 = sshll.u32 [#allocation9], 4
      %s178 = int_to_ptr.vmem [resolvable:$true] %s177
      %180 = dma.vmem_to_hbm [thread:$0]  %s178, 128, %s2, [#allocation6]
    $region36: #{tpu_custom_call.1} parent=1 // pred_fallthru
      _
    // Predicated region
    $region37: #{tpu_custom_call.1} parent=1 // pred_check
      _
    $region38: #{tpu_custom_call.1} parent=1 // pred_check_branch
      %182 = sbr.rel (0) target = $region40
    $region39: #{tpu_custom_call.1} parent=1 // pred_region
      %183 = dma.done [#allocation6], 128
    $region40: #{tpu_custom_call.1} parent=1 // pred_fallthru
      _
    %184 = vsyncpa [#allocation5], 1
    %185 = vsyncpa [#allocation8], 1
    %186 = vsyncpa [#allocation6], 1

</llo_original>
